<compile_context>
chip_gen: v7x
topology: tpu7x:2x2x1
jax: 0.10.0
libtpu: 0.0.40
codegen_flags: <defaults>
</compile_context>

<pallas_src>
import functools

import numpy as np
import jax
import jax.numpy as jnp
from jax.experimental import pallas as pl
from jax.experimental.pallas import tpu as pltpu

NUM_RELATIONS = 60
ATOM_FEATURE_DIMS = (119, 5, 12, 12, 10, 6, 6, 2, 2)   # OGB atom feature vocab sizes
BOND_FEATURE_DIMS = (5, 6, 2)                           # e0 + 5*e1 + 30*e2 in [0, 60)

EDGE_TILE = 8        # relation-homogeneous edge tile for the grouped message matmul
EDGE_KTILE = 128     # edge-contraction tile for the scatter matmul
NODE_TILE = 128      # node tile (parallel axis)
GPAD = 8             # graphs padded to 8 rows for the readout
VMEM_LIMIT = 32 * 1024 * 1024


def _cparams(sems):
    return pltpu.CompilerParams(dimension_semantics=sems,
                                vmem_limit_bytes=VMEM_LIMIT)


# ----------------------------------------------------------------------------
# Pallas kernels
# ----------------------------------------------------------------------------
def msg_kernel(half, tile_rel_ref, xsrc_ref, w_ref, norm_ref, o_ref):
    """Grouped-by-relation edge messages for one relation-homogeneous edge tile.

    msg = x_src @ [W_rgcn[rel] | W_graphconv_rel]  (bf16 MXU, f32 accum)
    The FastRGCNConv per-(dst, relation) mean normalization is applied to the
    rgcn half (lanes [0, half)); the graphconv half keeps scale 1 (sum aggr).
    """
    m = jnp.dot(xsrc_ref[...], w_ref[0], preferred_element_type=jnp.float32)
    lane = jax.lax.broadcasted_iota(jnp.int32, m.shape, 1)
    scale = jnp.where(lane < half, norm_ref[...], 1.0)
    o_ref[...] = (m * scale).astype(o_ref.dtype)


def combine_kernel(x_ref, wroot_ref, bias_ref, s_ref, msg_ref, o_ref, acc_ref):
    """acc = x @ [Wroot_rgcn | Wroot_gconv] + [b_rgcn | b_gconv] + sum_k S_dst @ msg;
    out = relu(acc).  Grid: (node tiles "parallel", edge tiles "arbitrary")."""
    k = pl.program_id(1)

    @pl.when(k == 0)
    def _():
        acc_ref[...] = (
            jnp.dot(x_ref[...], wroot_ref[...], preferred_element_type=jnp.float32)
            + bias_ref[...])

    acc_ref[...] += jnp.dot(s_ref[...], msg_ref[...],
                            preferred_element_type=jnp.float32)

    @pl.when(k == pl.num_programs(1) - 1)
    def _():
        o_ref[...] = jnp.maximum(acc_ref[...], 0.0).astype(o_ref.dtype)


def bn_stats_kernel(h_ref, o_ref, acc_ref):
    """Accumulate per-feature sum (row 0) and sum of squares (row 1) over node tiles."""
    i = pl.program_id(0)

    @pl.when(i == 0)
    def _():
        acc_ref[...] = jnp.zeros_like(acc_ref)

    h = h_ref[...].astype(jnp.float32)
    s = jnp.sum(h, axis=0, keepdims=True)
    sq = jnp.sum(h * h, axis=0, keepdims=True)
    rows = jax.lax.broadcasted_iota(jnp.int32, acc_ref.shape, 0)
    acc_ref[...] += jnp.where(rows == 0, s, 0.0) + jnp.where(rows == 1, sq, 0.0)

    @pl.when(i == pl.num_programs(0) - 1)
    def _():
        o_ref[...] = acc_ref[...]


def bn_apply_kernel(n_nodes, h_ref, stats_ref, gamma_ref, beta_ref, o_ref):
    """BatchNorm1d with training-mode batch statistics (matches the PyTorch module)."""
    h = h_ref[...].astype(jnp.float32)
    mean = stats_ref[0:1, :] * (1.0 / n_nodes)
    var = stats_ref[1:2, :] * (1.0 / n_nodes) - mean * mean
    inv = jax.lax.rsqrt(var + 1e-5)
    o_ref[...] = ((h - mean) * inv * gamma_ref[...] + beta_ref[...]).astype(o_ref.dtype)


def head_kernel(p_ref, h_ref, w1_ref, b1_ref, w2_ref, b2_ref, o_ref, acc_ref):
    """global_add/mean_pool (pool matrix accumulated over node tiles) -> lin1 -> relu -> lin2."""
    i = pl.program_id(0)

    @pl.when(i == 0)
    def _():
        acc_ref[...] = jnp.zeros_like(acc_ref)

    acc_ref[...] += jnp.dot(p_ref[...], h_ref[...],
                            preferred_element_type=jnp.float32)

    @pl.when(i == pl.num_programs(0) - 1)
    def _():
        z = jnp.dot(acc_ref[...].astype(jnp.bfloat16), w1_ref[...],
                    preferred_element_type=jnp.float32) + b1_ref[...]
        z = jnp.maximum(z, 0.0)
        o_ref[...] = jnp.dot(z.astype(jnp.bfloat16), w2_ref[...],
                             preferred_element_type=jnp.float32) + b2_ref[...]


# ----------------------------------------------------------------------------
# pallas_call wrappers
# ----------------------------------------------------------------------------
def rgcn_gconv_messages(tile_rel, xsrc, w_comb, norm, half):
    e_pad, fin = xsrc.shape
    fout2 = w_comb.shape[-1]
    n_tiles = e_pad // EDGE_TILE
    grid_spec = pltpu.PrefetchScalarGridSpec(
        num_scalar_prefetch=1,
        grid=(n_tiles,),
        in_specs=[
            pl.BlockSpec((EDGE_TILE, fin), lambda t, tr: (t, 0)),
            pl.BlockSpec((1, fin, fout2), lambda t, tr: (tr[t], 0, 0)),
            pl.BlockSpec((EDGE_TILE, 1), lambda t, tr: (t, 0)),
        ],
        out_specs=pl.BlockSpec((EDGE_TILE, fout2), lambda t, tr: (t, 0)),
    )
    return pl.pallas_call(
        functools.partial(msg_kernel, half),
        grid_spec=grid_spec,
        out_shape=jax.ShapeDtypeStruct((e_pad, fout2), jnp.bfloat16),
        compiler_params=_cparams(("parallel",)),
    )(tile_rel, xsrc, w_comb, norm)


def layer_combine(x, w_root, bias, s_dst, msg):
    n, fin = x.shape
    e_pad = msg.shape[0]
    fout2 = w_root.shape[-1]
    grid = (n // NODE_TILE, e_pad // EDGE_KTILE)
    return pl.pallas_call(
        combine_kernel,
        grid=grid,
        in_specs=[
            pl.BlockSpec((NODE_TILE, fin), lambda i, k: (i, 0)),
            pl.BlockSpec((fin, fout2), lambda i, k: (0, 0)),
            pl.BlockSpec((1, fout2), lambda i, k: (0, 0)),
            pl.BlockSpec((NODE_TILE, EDGE_KTILE), lambda i, k: (i, k)),
            pl.BlockSpec((EDGE_KTILE, fout2), lambda i, k: (k, 0)),
        ],
        out_specs=pl.BlockSpec((NODE_TILE, fout2), lambda i, k: (i, 0)),
        out_shape=jax.ShapeDtypeStruct((n, fout2), jnp.bfloat16),
        scratch_shapes=[pltpu.VMEM((NODE_TILE, fout2), jnp.float32)],
        compiler_params=_cparams(("parallel", "arbitrary")),
    )(x, w_root, bias, s_dst, msg)


def batchnorm(h, gamma, beta):
    n, c = h.shape
    grid = (n // NODE_TILE,)
    stats = pl.pallas_call(
        bn_stats_kernel,
        grid=grid,
        in_specs=[pl.BlockSpec((NODE_TILE, c), lambda i: (i, 0))],
        out_specs=pl.BlockSpec((8, c), lambda i: (0, 0)),
        out_shape=jax.ShapeDtypeStruct((8, c), jnp.float32),
        scratch_shapes=[pltpu.VMEM((8, c), jnp.float32)],
        compiler_params=_cparams(("arbitrary",)),
    )(h)
    return pl.pallas_call(
        functools.partial(bn_apply_kernel, float(n)),
        grid=grid,
        in_specs=[
            pl.BlockSpec((NODE_TILE, c), lambda i: (i, 0)),
            pl.BlockSpec((8, c), lambda i: (0, 0)),
            pl.BlockSpec((1, c), lambda i: (0, 0)),
            pl.BlockSpec((1, c), lambda i: (0, 0)),
        ],
        out_specs=pl.BlockSpec((NODE_TILE, c), lambda i: (i, 0)),
        out_shape=jax.ShapeDtypeStruct((n, c), jnp.bfloat16),
        compiler_params=_cparams(("parallel",)),
    )(h, stats, gamma, beta)


def readout_mlp(p, h, w1, b1, w2, b2):
    g_pad, n = p.shape
    c = h.shape[1]
    grid = (n // NODE_TILE,)
    return pl.pallas_call(
        head_kernel,
        grid=grid,
        in_specs=[
            pl.BlockSpec((g_pad, NODE_TILE), lambda i: (0, i)),
            pl.BlockSpec((NODE_TILE, c), lambda i: (i, 0)),
            pl.BlockSpec(w1.shape, lambda i: (0, 0)),
            pl.BlockSpec(b1.shape, lambda i: (0, 0)),
            pl.BlockSpec(w2.shape, lambda i: (0, 0)),
            pl.BlockSpec(b2.shape, lambda i: (0, 0)),
        ],
        out_specs=pl.BlockSpec((g_pad, 1), lambda i: (0, 0)),
        out_shape=jax.ShapeDtypeStruct((g_pad, 1), jnp.float32),
        scratch_shapes=[pltpu.VMEM((g_pad, c), jnp.float32)],
        compiler_params=_cparams(("arbitrary",)),
    )(p, h, w1, b1, w2, b2)


# ----------------------------------------------------------------------------
# Host-side graph bookkeeping (static shapes for the kernels)
# ----------------------------------------------------------------------------
def build_graph_structs(src, dst, rel, num_nodes):
    """Sort edges by relation, pad each relation group to a multiple of EDGE_TILE so
    every edge tile is relation-homogeneous, compute the FastRGCNConv per-(dst, rel)
    mean normalization, and build the 0/1 dst-scatter matrix (pad columns are zero)."""
    src = np.asarray(src, np.int32)
    dst = np.asarray(dst, np.int32)
    rel = np.asarray(rel, np.int32)

    order = np.argsort(rel, kind="stable")
    src_s, dst_s, rel_s = src[order], dst[order], rel[order]

    counts = np.zeros((num_nodes, NUM_RELATIONS), np.float32)
    np.add.at(counts, (dst_s, rel_s), 1.0)
    norm_s = 1.0 / np.maximum(counts[dst_s, rel_s], 1.0)   # FastRGCNConv aggr='mean'

    src_p, dst_p, norm_p, tile_rel = [], [], [], []
    for r in range(NUM_RELATIONS):
        sel = np.nonzero(rel_s == r)[0]
        if sel.size == 0:
            continue
        n_tiles = -(-sel.size // EDGE_TILE)
        pad = n_tiles * EDGE_TILE - sel.size
        src_p.extend([src_s[sel], np.zeros(pad, np.int32)])
        dst_p.extend([dst_s[sel], np.full(pad, -1, np.int32)])
        norm_p.extend([norm_s[sel], np.zeros(pad, np.float32)])
        tile_rel += [r] * n_tiles

    src_p = np.concatenate(src_p)
    dst_p = np.concatenate(dst_p)
    norm_p = np.concatenate(norm_p)

    # round the padded edge count up to the contraction tile (dummy tiles, rel 0)
    e0 = src_p.shape[0]
    e_pad = -(-e0 // EDGE_KTILE) * EDGE_KTILE
    extra = e_pad - e0
    src_p = np.concatenate([src_p, np.zeros(extra, np.int32)])
    dst_p = np.concatenate([dst_p, np.full(extra, -1, np.int32)])
    norm_p = np.concatenate([norm_p, np.zeros(extra, np.float32)])
    tile_rel += [0] * (extra // EDGE_TILE)

    s_dst = np.zeros((num_nodes, e_pad), np.float32)
    valid = dst_p >= 0
    s_dst[dst_p[valid], np.nonzero(valid)[0]] = 1.0

    return (jnp.asarray(np.asarray(tile_rel, np.int32)),
            jnp.asarray(src_p),
            jnp.asarray(norm_p.reshape(e_pad, 1)),
            jnp.asarray(s_dst, dtype=jnp.bfloat16))


# ----------------------------------------------------------------------------
# Parameters (deterministic, synthetic)
# ----------------------------------------------------------------------------
def init_params(key, in_channels, number_hidden_layers, hidden_out_channel,
                out_channel, k):
    keys = iter(jax.random.split(key, 128))

    def w(shape, scale=0.1, dtype=jnp.bfloat16):
        return (scale * jax.random.normal(next(keys), shape, jnp.float32)).astype(dtype)

    params = {}
    # AtomEncoder: one embedding table per categorical atom feature (summed).
    params["atom_tables"] = [w((d, in_channels), dtype=jnp.float32)
                             for d in ATOM_FEATURE_DIMS]

    layer_dims = ([(in_channels, hidden_out_channel)]
                  + [(2 * hidden_out_channel, hidden_out_channel)] * number_hidden_layers
                  + [(2 * hidden_out_channel, out_channel)])
    layers = []
    for fin, fout in layer_dims:
        w_rgcn = w((NUM_RELATIONS, fin, fout))       # FastRGCNConv per-relation weights
        w_rel_g = w((fin, fout))                     # GraphConv lin_rel weight (has bias)
        # combined per-edge message weight: rgcn half then graphconv half (cat order
        # matches torch.cat((x_rgcn, x_gconv), 1) in the module)
        w_comb = jnp.concatenate(
            [w_rgcn, jnp.broadcast_to(w_rel_g[None], (NUM_RELATIONS, fin, fout))],
            axis=-1)
        w_root = jnp.concatenate([w((fin, fout)), w((fin, fout))], axis=-1)
        bias = jnp.concatenate([w((1, fout), dtype=jnp.float32),
                                w((1, fout), dtype=jnp.float32)], axis=-1)
        layers.append(dict(w_comb=w_comb, w_root=w_root, bias=bias, half=fout))
    params["layers"] = layers

    # single BatchNorm shared by all non-final layers, exactly as in the module
    bn_dim = 2 * hidden_out_channel
    params["bn_gamma"] = jnp.ones((1, bn_dim), jnp.float32)
    params["bn_beta"] = jnp.zeros((1, bn_dim), jnp.float32)

    params["w1"] = w((2 * k * out_channel, 16))
    params["b1"] = w((1, 16), dtype=jnp.float32)
    params["w2"] = w((16, 1))
    params["b2"] = w((1, 1), dtype=jnp.float32)
    return params


# ----------------------------------------------------------------------------
# Forward pass
# ----------------------------------------------------------------------------
def inception_net_forward(params, x_atoms, edge_index, edge_attr, batch,
                          num_graphs, pool_layer="add"):
    num_nodes = x_atoms.shape[0]
    assert num_nodes % NODE_TILE == 0
    assert num_graphs <= GPAD

    # relation id per edge (same formula as the PyTorch module)
    rel = edge_attr[:, 0] + edge_attr[:, 1] * 5 + edge_attr[:, 2] * 30
    tile_rel, src_p, norm_p, s_dst = build_graph_structs(
        edge_index[0], edge_index[1], rel, num_nodes)

    # AtomEncoder: sum of the 9 categorical feature embeddings (gather + sum glue)
    x = jnp.zeros((num_nodes, params["atom_tables"][0].shape[1]), jnp.float32)
    for i, table in enumerate(params["atom_tables"]):
        x = x + jnp.take(table, x_atoms[:, i], axis=0)
    x = x.astype(jnp.bfloat16)

    n_layers = len(params["layers"])
    for li, layer in enumerate(params["layers"]):
        xsrc = jnp.take(x, src_p, axis=0)            # [E_pad, Fin] row gather (glue)
        msg = rgcn_gconv_messages(tile_rel, xsrc, layer["w_comb"], norm_p,
                                  layer["half"])
        h = layer_combine(x, layer["w_root"], layer["bias"], s_dst, msg)
        if li != n_layers - 1:
            h = batchnorm(h, params["bn_gamma"], params["bn_beta"])
        x = h

    # readout: pooling matrix [GPAD, N] ('add' or 'mean'), then the 2-layer MLP head
    batch_np = np.asarray(batch)
    p = np.zeros((GPAD, num_nodes), np.float32)
    p[batch_np, np.arange(num_nodes)] = 1.0
    if pool_layer == "mean":
        p = p / np.maximum(p.sum(axis=1, keepdims=True), 1.0)
    # TODO(synk): 'max' and 'sort' (global_sort_pool) readouts need data-dependent
    # max-scatter / sorting and are not implemented as Pallas kernels here.
    p = jnp.asarray(p, dtype=jnp.bfloat16)

    out = readout_mlp(p, x, params["w1"], params["b1"], params["w2"], params["b2"])
    return out[:num_graphs]


# ----------------------------------------------------------------------------
# Example run
# ----------------------------------------------------------------------------
if __name__ == "__main__":
    key = jax.random.PRNGKey(0)
    k_params, k_data = jax.random.split(key)

    # lane-dense hyperparameters: 2 * hidden_out_channel == in_channels == 128
    in_channels = 128
    hidden_out_channel = 64
    out_channel = 64
    number_hidden_layers = 1
    k = 1
    pool_layer = "add"
    N, E, G = 256, 512, 2

    params = init_params(k_params, in_channels, number_hidden_layers,
                         hidden_out_channel, out_channel, k)

    dkeys = jax.random.split(k_data, 16)
    # data.x: [N, 9] integer atom features
    x_atoms = jnp.stack(
        [jax.random.randint(dkeys[i], (N,), 0, d)
         for i, d in enumerate(ATOM_FEATURE_DIMS)], axis=1).astype(jnp.int32)
    # data.edge_index: [2, E]
    src = jax.random.randint(dkeys[10], (E,), 0, N)
    dst = jax.random.randint(dkeys[11], (E,), 0, N)
    edge_index = jnp.stack([src, dst]).astype(jnp.int32)
    # data.edge_attr: [E, 3] integer bond features
    edge_attr = jnp.stack(
        [jax.random.randint(dkeys[12 + i], (E,), 0, d)
         for i, d in enumerate(BOND_FEATURE_DIMS)], axis=1).astype(jnp.int32)
    # data.batch: first half of nodes in graph 0, rest in graph 1
    batch = jnp.concatenate([jnp.zeros((N // 2,), jnp.int32),
                             jnp.ones((N - N // 2,), jnp.int32)])

    out = inception_net_forward(params, x_atoms, edge_index, edge_attr, batch,
                                num_graphs=G, pool_layer=pool_layer)
    out = jax.block_until_ready(out)
    assert out.shape == (G, 1) and out.dtype == jnp.float32
    print("KERNEL_OK")
</pallas_src>

<mosaic_0001>
module attributes {stable_mosaic.version = 11 : i64} {
  func.func @msg_kernel(%arg0: i32, %arg1: memref<96xi32, #tpu.memory_space<smem>>, %arg2: memref<8x128xbf16, #tpu.memory_space<vmem>>, %arg3: memref<1x128x128xbf16, #tpu.memory_space<vmem>>, %arg4: memref<8x1xf32, #tpu.memory_space<vmem>>, %arg5: memref<8x128xbf16, #tpu.memory_space<vmem>>) attributes {dimension_semantics = [#tpu.dimension_semantics<parallel>], iteration_bounds = array<i64: 96>, scalar_prefetch = 1 : i64, scratch_operands = 0 : i64, tpu.core_type = #tpu.core_type<tc>, window_params = [{transform_indices = @transform_0, window_bounds = array<i64: 8, 128>}, {transform_indices = @transform_1, window_bounds = array<i64: 1, 128, 128>}, {transform_indices = @transform_2, window_bounds = array<i64: 8, 1>}, {transform_indices = @transform_3, window_bounds = array<i64: 8, 128>}]} {
    %c0 = arith.constant 0 : index
    %c0_0 = arith.constant 0 : index
    %0 = vector.load %arg2[%c0, %c0_0] : memref<8x128xbf16, #tpu.memory_space<vmem>>, vector<8x128xbf16>
    %c0_1 = arith.constant 0 : index
    %c0_2 = arith.constant 0 : index
    %c0_3 = arith.constant 0 : index
    %1 = vector.load %arg3[%c0_1, %c0_2, %c0_3] : memref<1x128x128xbf16, #tpu.memory_space<vmem>>, vector<1x128x128xbf16>
    %2 = vector.shape_cast %1 : vector<1x128x128xbf16> to vector<128x128xbf16>
    %cst = arith.constant dense<0.000000e+00> : vector<8x128xf32>
    %3 = tpu.matmul %0, %2, %cst {dimension_numbers = #tpu.dot_dimension_numbers<[1], [0], [0], [1], [0, 0, 1, 1], [], []>} : vector<8x128xbf16>, vector<128x128xbf16>, vector<8x128xf32> -> vector<8x128xf32>
    %4 = tpu.iota {dimensions = array<i32: 1>} : vector<8x128xi32>
    %c64_i32 = arith.constant 64 : i32
    %5 = vector.broadcast %c64_i32 : i32 to vector<8x128xi32>
    %6 = arith.cmpi slt, %4, %5 : vector<8x128xi32>
    %c0_4 = arith.constant 0 : index
    %c0_5 = arith.constant 0 : index
    %7 = vector.load %arg4[%c0_4, %c0_5] : memref<8x1xf32, #tpu.memory_space<vmem>>, vector<8x1xf32>
    %cst_6 = arith.constant 1.000000e+00 : f32
    %8 = vector.shape_cast %7 : vector<8x1xf32> to vector<8x1xf32>
    %9 = vector.broadcast %8 : vector<8x1xf32> to vector<8x128xf32>
    %10 = vector.broadcast %cst_6 : f32 to vector<8x128xf32>
    %11 = arith.select %6, %9, %10 : vector<8x128xi1>, vector<8x128xf32>
    %12 = arith.mulf %3, %11 : vector<8x128xf32>
    %13 = arith.truncf %12 : vector<8x128xf32> to vector<8x128xbf16>
    %c0_7 = arith.constant 0 : index
    %c0_8 = arith.constant 0 : index
    %14 = vector.load %arg5[%c0_7, %c0_8] : memref<8x128xbf16, #tpu.memory_space<vmem>>, vector<8x128xbf16>
    tpu.vector_store %arg5[%c0_7, %c0_8], %13 {strides = array<i32>} : memref<8x128xbf16, #tpu.memory_space<vmem>>, vector<8x128xbf16>,
    return
  }
  func.func @transform_0(%arg0: i32, %arg1: memref<96xi32, #tpu.memory_space<smem>>) -> (i32, i32) {
    %c0_i32 = arith.constant 0 : i32
    %c0_i32_0 = arith.constant 0 : i32
    return %arg0, %c0_i32 : i32, i32
  }
  func.func @transform_1(%arg0: i32, %arg1: memref<96xi32, #tpu.memory_space<smem>>) -> (i32, i32, i32) {
    %0 = arith.index_cast %arg0 : i32 to index
    %1 = memref.load %arg1[%0] : memref<96xi32, #tpu.memory_space<smem>>
    %c0_i32 = arith.constant 0 : i32
    %c0_i32_0 = arith.constant 0 : i32
    %c0_i32_1 = arith.constant 0 : i32
    return %1, %c0_i32, %c0_i32_0 : i32, i32, i32
  }
  func.func @transform_2(%arg0: i32, %arg1: memref<96xi32, #tpu.memory_space<smem>>) -> (i32, i32) {
    %c0_i32 = arith.constant 0 : i32
    %c0_i32_0 = arith.constant 0 : i32
    return %arg0, %c0_i32 : i32, i32
  }
  func.func @transform_3(%arg0: i32, %arg1: memref<96xi32, #tpu.memory_space<smem>>) -> (i32, i32) {
    %c0_i32 = arith.constant 0 : i32
    %c0_i32_0 = arith.constant 0 : i32
    return %arg0, %c0_i32 : i32, i32
  }
}

</mosaic_0001>

<llo_original>
// kernel: tpu_custom_call.1
$region0: #{tpu_custom_call.1}
  #allocation0 [shape = 'u32[]', space=smem, size = 0x4, offset = 0x4, fixed_abs, tag = 'smem constant byte address 0x4 - core index']
  #allocation1 [shape = 'u32[144,128]{1,0:T(1,128)}', space=vmem, size = 0x12000, scoped, tag = 'internal scratch']
  #allocation2 [shape = 's32[1]{0}', space=sflag, size = 0x4, scoped, tag = 'scoped memory for tpu_custom_call.1']
  #allocation3 [shape = 'u8[512]{0}', space=smem, size = 0x200, scoped, tag = 'prefetched SMEM operand 0']
  %s0 = inlined_call_operand.hbm [shape: s32[96], index: 0, kind: input, shape index: {}]
  %s1 = inlined_call_operand.hbm [shape: bf16[768,128], index: 1, kind: input, shape index: {}]
  %s2 = inlined_call_operand.hbm [shape: bf16[60,128,128], index: 2, kind: input, shape index: {}]
  %s3 = inlined_call_operand.vmem [shape: f32[768,1], index: 3, kind: input, shape index: {}]
  %s4 = inlined_call_operand.hbm [shape: bf16[768,128], index: 4, kind: output, shape index: {}]
  %s5 = sld [smem:[#allocation0]]
  $region53: #{tpu_custom_call.1} parent=0
    _
  %s7 = ssub.s32 1, %s5
  %s8 = scalar_select 0, %s7, %s5
  %10 = dma.hbm_to_smem %s0, 16, [#allocation3], [#allocation2]
  %11 = dma.done [#allocation2], 16
  %12 = sfence
  $region1: #{tpu_custom_call.1} parent=0
    #allocation4 [shape = 'u8[4096]{0}', space=vmem, size = 0x1000, scoped, tag = 'input window, operand 1']
    #allocation5 [shape = 's32[2]{0}', space=sflag, size = 0x8, scoped, tag = 'scoped memory for tpu_custom_call.1']
    #allocation6 [shape = 's32[2]{0}', space=sflag, size = 0x8, scoped, tag = 'scoped memory for tpu_custom_call.1']
    #allocation7 [shape = 'u8[65536]{0}', space=vmem, size = 0x10000, scoped, tag = 'input window, operand 2']
    #allocation8 [shape = 's32[2]{0}', space=sflag, size = 0x8, scoped, tag = 'scoped memory for tpu_custom_call.1']
    #allocation9 [shape = 'u8[4096]{0}', space=vmem, size = 0x1000, scoped, tag = 'output window, operand 0']
    %13 = vsyncpa [#allocation5], 0
    %s14 = scalar_lea.sflag [#allocation5], 1
    %15 = vsyncpa %s14, 0
    %16 = vsyncpa [#allocation8], 0
    %s17 = scalar_lea.sflag [#allocation8], 1
    %18 = vsyncpa %s17, 0
    %19 = vsyncpa [#allocation6], 0
    %s20 = scalar_lea.sflag [#allocation6], 1
    %21 = vsyncpa %s20, 0
    loop: start=0, step=1, limit=98
    $region2: #{tpu_custom_call.1} parent=1 // loop_pre_header
      _
    $region3: #{tpu_custom_call.1} parent=1 // loop_header
      %s23 = sphi 0, %s27
      %p24 = scmp.ge.s32.totalorder %s23, 98
      %s33 = sphi 0, %s35
      %s36 = sphi 0, %s33
      %s37 = sphi 0, %s36
      %s53 = sphi 0, %s37
      %s61 = sphi 0, %s63
      %s64 = sphi 0, %s61
      %s65 = sphi 0, %s64
      %s81 = sphi 0, %s65
      %s87 = sphi 0, %s89
      %s90 = sphi 0, %s87
      %s91 = sphi 0, %s90
      %s107 = sphi 0, %s91
      %s113 = sphi 0, %s115
      %s116 = sphi 0, %s113
      %s117 = sphi 0, %s116
      %s133 = sphi 0, %s117
    $region4: #{tpu_custom_call.1} parent=1 // loop_header_branch
      %26 = sbr.rel (%p24) target = $region8
    $region5: #{tpu_custom_call.1} parent=1 // loop_body
      %s28 = ssub.s32 %s23, 1
      %s29 = ssub.s32 %s23, 2
      %s30 = sadd.s32 %s23, 1
      %s31 = ssub.s32 %s23, %s30
      %p32 = scmp.eq.s32.totalorder %s31, 0
      %s34 = sadd.s32 %s33, 1
      %s35 = scalar_select %p32, %s33, %s34
      %p38 = pneg %p32
      %p39 = scmp.eq.s32.totalorder %s23, 95
      %p40 = por %p38, %p39
      %p41 = scmp.ne.s32.totalorder %s33, %s36
      %p42 = scmp.eq.s32.totalorder %s23, 0
      %p43 = por %p41, %p42
      %p44 = scmp.ne.s32.totalorder %s33, %s36
      %p45 = scmp.eq.s32.totalorder %s28, 95
      %p46 = por %p44, %p45
      %p47 = scmp.ne.s32.totalorder %s36, %s37
      %p48 = scmp.eq.s32.totalorder %s28, 0
      %p49 = por %p47, %p48
      %p50 = scmp.ne.s32.totalorder %s36, %s37
      %p51 = scmp.eq.s32.totalorder %s29, 95
      %p52 = por %p50, %p51
      %p54 = scmp.ne.s32.totalorder %s37, %s53
      %p55 = scmp.eq.s32.totalorder %s29, 0
      %p56 = por %p54, %p55
      %s57 = sld [smem:[#allocation3 + %s23]]
      %s58 = sld [smem:[#allocation3 + %s30]]
      %s59 = ssub.s32 %s57, %s58
      %p60 = scmp.eq.s32.totalorder %s59, 0
      %s62 = sadd.s32 %s61, 1
      %s63 = scalar_select %p60, %s61, %s62
      %p66 = pneg %p60
      %p67 = scmp.eq.s32.totalorder %s23, 95
      %p68 = por %p66, %p67
      %p69 = scmp.ne.s32.totalorder %s61, %s64
      %p70 = scmp.eq.s32.totalorder %s23, 0
      %p71 = por %p69, %p70
      %p72 = scmp.ne.s32.totalorder %s61, %s64
      %p73 = scmp.eq.s32.totalorder %s28, 95
      %p74 = por %p72, %p73
      %p75 = scmp.ne.s32.totalorder %s64, %s65
      %p76 = scmp.eq.s32.totalorder %s28, 0
      %p77 = por %p75, %p76
      %p78 = scmp.ne.s32.totalorder %s64, %s65
      %p79 = scmp.eq.s32.totalorder %s29, 95
      %p80 = por %p78, %p79
      %p82 = scmp.ne.s32.totalorder %s65, %s81
      %p83 = scmp.eq.s32.totalorder %s29, 0
      %p84 = por %p82, %p83
      %s85 = ssub.s32 %s23, %s30
      %p86 = scmp.eq.s32.totalorder %s85, 0
      %s88 = sadd.s32 %s87, 1
      %s89 = scalar_select %p86, %s87, %s88
      %p92 = pneg %p86
      %p93 = scmp.eq.s32.totalorder %s23, 95
      %p94 = por %p92, %p93
      %p95 = scmp.ne.s32.totalorder %s87, %s90
      %p96 = scmp.eq.s32.totalorder %s23, 0
      %p97 = por %p95, %p96
      %p98 = scmp.ne.s32.totalorder %s87, %s90
      %p99 = scmp.eq.s32.totalorder %s28, 95
      %p100 = por %p98, %p99
      %p101 = scmp.ne.s32.totalorder %s90, %s91
      %p102 = scmp.eq.s32.totalorder %s28, 0
      %p103 = por %p101, %p102
      %p104 = scmp.ne.s32.totalorder %s90, %s91
      %p105 = scmp.eq.s32.totalorder %s29, 95
      %p106 = por %p104, %p105
      %p108 = scmp.ne.s32.totalorder %s91, %s107
      %p109 = scmp.eq.s32.totalorder %s29, 0
      %p110 = por %p108, %p109
      %s111 = ssub.s32 %s23, %s30
      %p112 = scmp.eq.s32.totalorder %s111, 0
      %s114 = sadd.s32 %s113, 1
      %s115 = scalar_select %p112, %s113, %s114
      %p118 = pneg %p112
      %p119 = scmp.eq.s32.totalorder %s23, 95
      %p120 = por %p118, %p119
      %p121 = scmp.ne.s32.totalorder %s113, %s116
      %p122 = scmp.eq.s32.totalorder %s23, 0
      %p123 = por %p121, %p122
      %p124 = scmp.ne.s32.totalorder %s113, %s116
      %p125 = scmp.eq.s32.totalorder %s28, 95
      %p126 = por %p124, %p125
      %p127 = scmp.ne.s32.totalorder %s116, %s117
      %p128 = scmp.eq.s32.totalorder %s28, 0
      %p129 = por %p127, %p128
      %p130 = scmp.ne.s32.totalorder %s116, %s117
      %p131 = scmp.eq.s32.totalorder %s29, 95
      %p132 = por %p130, %p131
      %p134 = scmp.ne.s32.totalorder %s117, %s133
      %p135 = scmp.eq.s32.totalorder %s29, 0
      %p136 = por %p134, %p135
      %p137 = scmp.le.s32.totalorder 1, %s23
      %p138 = scmp.lt.s32.totalorder %s23, 97
      %p139 = pnand %p137, %p138
      %p140 = pneg %p139
      // Predicated region
      $region9: #{tpu_custom_call.1} parent=5 // pred_check
        _
      $region10: #{tpu_custom_call.1} parent=5 // pred_check_branch
        %142 = sbr.rel (%p139) target = $region12
      $region11: #{tpu_custom_call.1} parent=5 // pred_region
        %s143 = ssub.s32 %s23, 1
      $region12: #{tpu_custom_call.1} parent=5 // pred_fallthru
        _
      %p144 = scmp.lt.s32.totalorder %s23, 96
      // Predicated region
      $region13: #{tpu_custom_call.1} parent=5 // pred_check
        %p145 = pneg %p144
      $region14: #{tpu_custom_call.1} parent=5 // pred_check_branch
        %147 = sbr.rel (%p145) target = $region16
      $region15: #{tpu_custom_call.1} parent=5 // pred_region
        // Predicated region
        $region17: #{tpu_custom_call.1} parent=15 // pred_check
          %p148 = pneg %p43
        $region18: #{tpu_custom_call.1} parent=15 // pred_check_branch
          %150 = sbr.rel (%p148) target = $region20
        $region19: #{tpu_custom_call.1} parent=15 // pred_region
          %s151 = sand.u32 %s33, 1
          %s152 = scalar_lea.sflag [#allocation5], %s151
          %s153 = sand.u32 %s33, 1
          %s154 = smul.addr %s153, 4
          %s155 = scalar_lea.vmem [#allocation4], %s154
          %s157 = ssub.s32 64, 64
          %158 = vsyncadd %s152, %s157
          %s159 = smul.addr %s23, 64
          %s160 = scalar_lea.hbm %s1, %s159
          %s162 = sshll.u32 %s155, 4
          %s163 = int_to_ptr.vmem [resolvable:$true] %s162
          %165 = dma.hbm_to_vmem [thread:$0]  %s160, 64, %s163, %s152
        $region20: #{tpu_custom_call.1} parent=15 // pred_fallthru
          _
        // Predicated region
        $region21: #{tpu_custom_call.1} parent=15 // pred_check
          %p166 = pneg %p71
        $region22: #{tpu_custom_call.1} parent=15 // pred_check_branch
          %168 = sbr.rel (%p166) target = $region24
        $region23: #{tpu_custom_call.1} parent=15 // pred_region
          %s169 = sand.u32 %s61, 1
          %s170 = scalar_lea.sflag [#allocation8], %s169
          %s171 = sand.u32 %s61, 1
          %s172 = smul.addr %s171, 64
          %s173 = scalar_lea.vmem [#allocation7], %s172
          %s174 = sld [smem:[#allocation3 + %s23]]
          %s176 = ssub.s32 1024, 1024
          %177 = vsyncadd %s170, %s176
          %s178 = smul.addr %s174, 16
          %s179 = smul.addr %s178, 64
          %s180 = scalar_lea.hbm %s2, %s179
          %s181 = sshll.u32 %s173, 4
          %s182 = int_to_ptr.vmem [resolvable:$true] %s181
          %187 = dma.hbm_to_vmem [thread:$0]  %s180, 1024, %s182, %s170, 64, 64, 4
        $region24: #{tpu_custom_call.1} parent=15 // pred_fallthru
          _
        // Predicated region
        $region25: #{tpu_custom_call.1} parent=15 // pred_check
          %p188 = pneg %p97
        $region26: #{tpu_custom_call.1} parent=15 // pred_check_branch
          %190 = sbr.rel (%p188) target = $region28
        $region27: #{tpu_custom_call.1} parent=15 // pred_region
          %p191 = scmp.lt.s32.totalorder %s23, 95
          %s192 = scalar_select %p191, %s23, 95
          %s193 = smul.addr %s192, 8
          %s194 = scalar_lea.vmem %s3, %s193
        $region28: #{tpu_custom_call.1} parent=15 // pred_fallthru
          _
      $region16: #{tpu_custom_call.1} parent=5 // pred_fallthru
        _
      %p195 = scmp.le.s32.totalorder 1, %s23
      %p196 = scmp.lt.s32.totalorder %s23, 97
      %p197 = pnand %p195, %p196
      %p198 = pneg %p197
      // Predicated region
      $region29: #{tpu_custom_call.1} parent=5 // pred_check
        _
      $region30: #{tpu_custom_call.1} parent=5 // pred_check_branch
        %200 = sbr.rel (%p197) target = $region32
      $region31: #{tpu_custom_call.1} parent=5 // pred_region
        %s201 = ssub.s32 %s23, 1
        %s202 = sand.u32 %s36, 1
        %s203 = scalar_lea.sflag [#allocation5], %s202
        %s204 = sand.u32 %s36, 1
        %s205 = smul.addr %s204, 4
        %s206 = scalar_lea.vmem [#allocation4], %s205
        // Predicated region
        $region33: #{tpu_custom_call.1} parent=31 // pred_check
          %p207 = pneg %p49
        $region34: #{tpu_custom_call.1} parent=31 // pred_check_branch
          %209 = sbr.rel (%p207) target = $region36
        $region35: #{tpu_custom_call.1} parent=31 // pred_region
          %210 = dma.done %s203, 64
        $region36: #{tpu_custom_call.1} parent=31 // pred_fallthru
          _
        %s211 = sand.u32 %s64, 1
        %s212 = scalar_lea.sflag [#allocation8], %s211
        %s213 = sand.u32 %s64, 1
        %s214 = smul.addr %s213, 64
        %s215 = scalar_lea.vmem [#allocation7], %s214
        // Predicated region
        $region37: #{tpu_custom_call.1} parent=31 // pred_check
          %p216 = pneg %p77
        $region38: #{tpu_custom_call.1} parent=31 // pred_check_branch
          %218 = sbr.rel (%p216) target = $region40
        $region39: #{tpu_custom_call.1} parent=31 // pred_region
          %219 = dma.done %s212, 1024
        $region40: #{tpu_custom_call.1} parent=31 // pred_fallthru
          _
        %s220 = sand.u32 %s36, 1
        %s221 = scalar_lea.sflag [#allocation5], %s220
        %s222 = sand.u32 %s36, 1
        %s223 = smul.addr %s222, 4
        %s224 = scalar_lea.vmem [#allocation4], %s223
        %p225 = pneg %p49
        %p226 = pneg %p46
        %s227 = sand.u32 %s64, 1
        %s228 = scalar_lea.sflag [#allocation8], %s227
        %s229 = sand.u32 %s64, 1
        %s230 = smul.addr %s229, 64
        %s231 = scalar_lea.vmem [#allocation7], %s230
        %p232 = pneg %p77
        %p233 = pneg %p74
        %p234 = scmp.lt.s32.totalorder %s28, 95
        %s235 = scalar_select %p234, %s28, 95
        %s236 = smul.addr %s235, 8
        %s237 = scalar_lea.vmem %s3, %s236
        %p238 = pneg %p103
        %p239 = pneg %p100
        %p240 = pneg %p129
        %p241 = pneg %p126
        %s242 = sand.u32 %s116, 1
        %s243 = scalar_lea.sflag [#allocation6], %s242
        %s244 = sand.u32 %s116, 1
        %s245 = smul.addr %s244, 4
        %s246 = scalar_lea.vmem [#allocation9], %s245
        %s247 = sld [smem:[#allocation3 + %s28]]
        %p248 = scmp.lt.s32.totalorder %s28, 95
        %s249 = scalar_select %p248, %s28, 95
        %s250 = smul.addr %s249, 8
        %s251 = scalar_lea.vmem %s3, %s250
        %v253 = vld [vmem:[%s206] sm:$0xf]
        %v254 = vld [vmem:[%s215] sm:$0xf]
        %v255 = vld [vmem:[%s215 + $0x4] sm:$0xf]
        %v256 = vld [vmem:[%s215 + $0x8] sm:$0xf]
        %v257 = vld [vmem:[%s215 + $0xc] sm:$0xf]
        %v258 = vld [vmem:[%s215 + $0x10] sm:$0xf]
        %v259 = vld [vmem:[%s215 + $0x14] sm:$0xf]
        %v260 = vld [vmem:[%s215 + $0x18] sm:$0xf]
        %v261 = vld [vmem:[%s215 + $0x1c] sm:$0xf]
        %v262 = vld [vmem:[%s215 + $0x20] sm:$0xf]
        %v263 = vld [vmem:[%s215 + $0x24] sm:$0xf]
        %v264 = vld [vmem:[%s215 + $0x28] sm:$0xf]
        %v265 = vld [vmem:[%s215 + $0x2c] sm:$0xf]
        %v266 = vld [vmem:[%s215 + $0x30] sm:$0xf]
        %v267 = vld [vmem:[%s215 + $0x34] sm:$0xf]
        %v268 = vld [vmem:[%s215 + $0x38] sm:$0xf]
        %v269 = vld [vmem:[%s215 + $0x3c] sm:$0xf]
        %v286 = vunpack.c.l.b16 %v254
        %v287 = vunpack.c.l.b16 %v255
        %v288 = vunpack.c.l.b16 %v256
        %v289 = vunpack.c.l.b16 %v257
        %v290 = vunpack.c.l.b16 %v258
        %v291 = vunpack.c.l.b16 %v259
        %v292 = vunpack.c.l.b16 %v260
        %v293 = vunpack.c.l.b16 %v261
        %v294 = vunpack.c.l.b16 %v262
        %v295 = vunpack.c.l.b16 %v263
        %v296 = vunpack.c.l.b16 %v264
        %v297 = vunpack.c.l.b16 %v265
        %v298 = vunpack.c.l.b16 %v266
        %v299 = vunpack.c.l.b16 %v267
        %v300 = vunpack.c.l.b16 %v268
        %v301 = vunpack.c.l.b16 %v269
        %v302 = vpack.c.b16 %v287, %v286
        %v303 = vpack.c.b16 %v289, %v288
        %v304 = vpack.c.b16 %v291, %v290
        %v305 = vpack.c.b16 %v293, %v292
        %v306 = vpack.c.b16 %v295, %v294
        %v307 = vpack.c.b16 %v297, %v296
        %v308 = vpack.c.b16 %v299, %v298
        %v309 = vpack.c.b16 %v301, %v300
        %318 = vmatprep.subr.bf16.mxu0 0
        %319 = vmatpush1.bf16.msra.mxu0 %v302
        %320 = vmatprep.subr.bf16.mxu0 0
        %321 = vmatpush1.bf16.msra.mxu0 %v303
        %322 = vmatprep.subr.bf16.mxu0 0
        %323 = vmatpush1.bf16.msra.mxu0 %v304
        %324 = vmatprep.subr.bf16.mxu0 0
        %325 = vmatpush1.bf16.msra.mxu0 %v305
        %326 = vmatprep.subr.bf16.mxu0 0
        %327 = vmatpush1.bf16.msra.mxu0 %v306
        %328 = vmatprep.subr.bf16.mxu0 0
        %329 = vmatpush1.bf16.msra.mxu0 %v307
        %330 = vmatprep.subr.bf16.mxu0 0
        %331 = vmatpush1.bf16.msra.mxu0 %v308
        %332 = vmatprep.subr.bf16.mxu0 0
        %333 = vmatpush1.bf16.msra.mxu0 %v309
        %334 = vmatprep.subr.bf16.mxu0 0
        %335 = vmatpush1.bf16.msra.mxu0 0
        %336 = vmatprep.subr.bf16.mxu0 0
        %337 = vmatpush1.bf16.msra.mxu0 0
        %338 = vmatprep.subr.bf16.mxu0 0
        %339 = vmatpush1.bf16.msra.mxu0 0
        %340 = vmatprep.subr.bf16.mxu0 0
        %341 = vmatpush1.bf16.msra.mxu0 0
        %342 = vmatprep.subr.bf16.mxu0 0
        %343 = vmatpush1.bf16.msra.mxu0 0
        %344 = vmatprep.subr.bf16.mxu0 0
        %345 = vmatpush1.bf16.msra.mxu0 0
        %346 = vmatprep.subr.bf16.mxu0 0
        %347 = vmatpush1.bf16.msra.mxu0 0
        %348 = vmatprep.subr.bf16.mxu0 0
        %349 = vmatpush1.bf16.msra.mxu0 0
        %350 = vmatprep.mubr.bf16.mxu0 0
        %351 = vmatmul.mubr.bf16.gmra.mrb[0].mxu0 %v253
        %v352 = vpop.f32.mrb[0].mxu0
        %v353 = vadd.f32 0.0, %v352
        %v354 = vpop.f32.mrb[0].mxu0
        %v355 = vpop.f32.mrb[0].mxu0
        %v356 = vpop.f32.mrb[0].mxu0
        %357 = vdwg.mxu0
        %v358 = vlaneseq
        %v359 = vand.u32 %v358, 127
        %vm360 = vcmp.lt.s32.totalorder %v359, 64
        %v361 = vld [vmem:[%s251] sm:$0xff]
        %363 = vset.pattern.permute.xlu0 0
        %364 = vperm.xlu0 %363, %v361
        %v365 = vpop.permute.xlu0 %364
        %v367 = vsel %vm360, %v365, 1.0
        %v368 = vmul.f32 %v353, %v367
        %v369 = vpack.c.bf16 %v368, %v368
        %370 = vst [vmem:[%s246] sm:$0xf] %v369
        %s371 = sand.u32 %s116, 1
        %s372 = scalar_lea.sflag [#allocation6], %s371
        %s373 = sand.u32 %s116, 1
        %s374 = smul.addr %s373, 4
        %s375 = scalar_lea.vmem [#allocation9], %s374
        // Predicated region
        $region41: #{tpu_custom_call.1} parent=31 // pred_check
          %p376 = pneg %p126
        $region42: #{tpu_custom_call.1} parent=31 // pred_check_branch
          %378 = sbr.rel (%p376) target = $region44
        $region43: #{tpu_custom_call.1} parent=31 // pred_region
          %s380 = ssub.s32 64, 64
          %381 = vsyncadd %s372, %s380
          %s382 = smul.addr %s28, 64
          %s383 = scalar_lea.hbm %s4, %s382
          %s385 = sshll.u32 %s375, 4
          %s386 = int_to_ptr.vmem [resolvable:$true] %s385
          %388 = dma.vmem_to_hbm [thread:$0]  %s386, 64, %s383, %s372
        $region44: #{tpu_custom_call.1} parent=31 // pred_fallthru
          _
      $region32: #{tpu_custom_call.1} parent=5 // pred_fallthru
        _
      %p389 = scmp.le.s32.totalorder 2, %s23
      // Predicated region
      $region45: #{tpu_custom_call.1} parent=5 // pred_check
        %p390 = pneg %p389
      $region46: #{tpu_custom_call.1} parent=5 // pred_check_branch
        %392 = sbr.rel (%p390) target = $region48
      $region47: #{tpu_custom_call.1} parent=5 // pred_region
        %s393 = ssub.s32 %s23, 2
        // Predicated region
        $region49: #{tpu_custom_call.1} parent=47 // pred_check
          %p394 = pneg %p132
        $region50: #{tpu_custom_call.1} parent=47 // pred_check_branch
          %396 = sbr.rel (%p394) target = $region52
        $region51: #{tpu_custom_call.1} parent=47 // pred_region
          %s397 = sand.u32 %s117, 1
          %s398 = scalar_lea.sflag [#allocation6], %s397
          %s399 = sand.u32 %s117, 1
          %s400 = smul.addr %s399, 4
          %s401 = scalar_lea.vmem [#allocation9], %s400
          %402 = dma.done %s398, 64
        $region52: #{tpu_custom_call.1} parent=47 // pred_fallthru
          _
      $region48: #{tpu_custom_call.1} parent=5 // pred_fallthru
        _
    $region6: #{tpu_custom_call.1} parent=1 // loop_footer
      %s27 = sadd.s32 1, %s23
    $region7: #{tpu_custom_call.1} parent=1 // loop_footer_branch
      %22 = sbr.rel target = $region3
    $region8: #{tpu_custom_call.1} parent=1 // loop_exit
      _
    %403 = vsyncpa [#allocation5], 1
    %s404 = scalar_lea.sflag [#allocation5], 1
    %405 = vsyncpa %s404, 1
    %406 = vsyncpa [#allocation8], 1
    %s407 = scalar_lea.sflag [#allocation8], 1
    %408 = vsyncpa %s407, 1
    %409 = vsyncpa [#allocation6], 1
    %s410 = scalar_lea.sflag [#allocation6], 1
    %411 = vsyncpa %s410, 1

</llo_original>
